<compile_context>
chip_gen: v5e
topology: v5e:2x2
jax: 0.10.0
libtpu: 0.0.40
codegen_flags: <defaults>
</compile_context>

<pallas_src>
import numpy as np
import jax
import jax.numpy as jnp
from jax.experimental import pallas as pl
from jax.experimental.pallas import tpu as pltpu

# ---------------- model hyper-parameters (small, deterministic) --------------
B = 2            # batch
STATE_DIM = 16   # lidar beams
HIDDEN = 32
ACTION = 4

C1, K1, PAD1 = 8, 5, 2
C2, K2, PAD2 = 16, 5, 2
STRIDE = 2
L1 = (STATE_DIM + 2 * PAD1 - K1) // STRIDE + 1          # 8
L2 = (L1 + 2 * PAD2 - K2) // STRIDE + 1                 # 4
FEAT_DIM = C2 * L2                                      # 64 (= backbone.out_dim)

LOG_STD_MIN = -20.0
LOG_STD_MAX = 2.0

N_PAD = 128                       # lane-dense output width (mean|log_std|zeros)
XP_W = STATE_DIM + 2 * PAD1       # 20 (conv1 length-padded input width)
XP_PAD_W = 24                     # padded to a sublane-friendly multiple of 8

# ---- packed weight-slab row offsets (all weight blocks start at 8-multiples) --
R_W1 = 0                          # (24, 64)  conv1 band (rows 20:24 zero)
R_W2 = 24                         # (64, 64)  conv2 band
R_FC1 = 88                        # (64, 32)  fc1 (length-major row permutation)
R_FC2 = 152                       # (32, 32)  fc2
R_HEAD = 184                      # (32, 128) [mean_w | logstd_w | zeros]
R_B1 = 216                        # (1, 64)   conv1 bias tiled over L1 positions
R_B2 = 217                        # (1, 64)   conv2 bias tiled over L2 positions
R_BFC1 = 218                      # (1, 32)
R_BFC2 = 219                      # (1, 32)
R_BHEAD = 220                     # (1, 128)  [mean_b | logstd_b | zeros]
WSLAB_ROWS = 224


# ----------------------------- fused Pallas kernel ----------------------------
def _policy_kernel(xp_ref, w_ref, o_ref):
    """Whole forward pass on one VMEM-resident batch block.

    xp_ref : (bm, XP_PAD_W)  batch rows, length already zero-padded for conv1.
    w_ref  : (WSLAB_ROWS, 128) packed weight/bias slab (static sub-views).
    o_ref  : (bm, N_PAD) — lanes [0:A] = mean, [A:2A] = clamped log_std.
    """
    x = xp_ref[...]                                                   # (bm, 24)

    # conv1 as a banded matmul: (bm,24) @ (24,64) -> batch-major (bm, L1*C1)
    y1 = jnp.maximum(
        jnp.dot(x, w_ref[R_W1:R_W1 + XP_PAD_W, 0:L1 * C1],
                preferred_element_type=jnp.float32)
        + w_ref[R_B1:R_B1 + 1, 0:L1 * C1], 0.0)

    # conv2 as a banded matmul: (bm,64) @ (64,64) -> (bm, L2*C2)
    y2 = jnp.maximum(
        jnp.dot(y1, w_ref[R_W2:R_W2 + L1 * C1, 0:L2 * C2],
                preferred_element_type=jnp.float32)
        + w_ref[R_B2:R_B2 + 1, 0:L2 * C2], 0.0)

    # fc1 (flatten already folded into the row permutation of the weights)
    h = jnp.maximum(
        jnp.dot(y2, w_ref[R_FC1:R_FC1 + L2 * C2, 0:HIDDEN],
                preferred_element_type=jnp.float32)
        + w_ref[R_BFC1:R_BFC1 + 1, 0:HIDDEN], 0.0)

    # fc2
    h = jnp.maximum(
        jnp.dot(h, w_ref[R_FC2:R_FC2 + HIDDEN, 0:HIDDEN],
                preferred_element_type=jnp.float32)
        + w_ref[R_BFC2:R_BFC2 + 1, 0:HIDDEN], 0.0)

    # fused mean / log_std head: one lane-dense 128-wide matmul + store
    y = (jnp.dot(h, w_ref[R_HEAD:R_HEAD + HIDDEN, :],
                 preferred_element_type=jnp.float32)
         + w_ref[R_BHEAD:R_BHEAD + 1, :])

    lane = jax.lax.broadcasted_iota(jnp.int32, y.shape, 1)
    is_logstd = (lane >= ACTION) & (lane < 2 * ACTION)
    o_ref[...] = jnp.where(is_logstd, jnp.clip(y, LOG_STD_MIN, LOG_STD_MAX), y)


# ------------------------------- wrapper --------------------------------------
def _prep_operands(params):
    """Pure layout plumbing: build the packed banded-weight slab (trace time)."""
    # conv1 band: W1_band[2l + k, l*C1 + c] = conv1_w[c, 0, k]
    w1 = params["conv1_w"].reshape(C1, K1)                              # (C1, K1)
    w1_band = jnp.zeros((XP_PAD_W, L1 * C1), jnp.float32)
    for l in range(L1):
        w1_band = w1_band.at[STRIDE * l:STRIDE * l + K1,
                             l * C1:(l + 1) * C1].set(w1.T)

    # conv2 band: W2_band[l1*C1 + c1, l2*C2 + c2] = conv2_w[c2, c1, k],
    # l1 = 2*l2 - PAD2 + k; out-of-range taps stay zero (== zero padding).
    w2 = params["conv2_w"]                                              # (C2,C1,K2)
    w2_band = jnp.zeros((L1 * C1, L2 * C2), jnp.float32)
    for l2 in range(L2):
        for k in range(K2):
            l1 = STRIDE * l2 - PAD2 + k
            if 0 <= l1 < L1:
                w2_band = w2_band.at[l1 * C1:(l1 + 1) * C1,
                                     l2 * C2:(l2 + 1) * C2].set(
                    jnp.transpose(w2[:, :, k]))

    # fc1 rows permuted from torch channel-major flatten (c2*L2+l2) to the
    # in-kernel length-major lane layout (l2*C2+c2):
    fc1wp = (params["fc1_w"].reshape(C2, L2, HIDDEN)
             .transpose(1, 0, 2).reshape(L2 * C2, HIDDEN))

    slab = jnp.zeros((WSLAB_ROWS, N_PAD), jnp.float32)
    slab = slab.at[R_W1:R_W1 + XP_PAD_W, 0:L1 * C1].set(w1_band)
    slab = slab.at[R_W2:R_W2 + L1 * C1, 0:L2 * C2].set(w2_band)
    slab = slab.at[R_FC1:R_FC1 + L2 * C2, 0:HIDDEN].set(fc1wp)
    slab = slab.at[R_FC2:R_FC2 + HIDDEN, 0:HIDDEN].set(params["fc2_w"])
    slab = slab.at[R_HEAD:R_HEAD + HIDDEN, 0:ACTION].set(params["mean_w"])
    slab = slab.at[R_HEAD:R_HEAD + HIDDEN, ACTION:2 * ACTION].set(params["logstd_w"])
    slab = slab.at[R_B1, 0:L1 * C1].set(jnp.tile(params["conv1_b"], L1))
    slab = slab.at[R_B2, 0:L2 * C2].set(jnp.tile(params["conv2_b"], L2))
    slab = slab.at[R_BFC1, 0:HIDDEN].set(params["fc1_b"])
    slab = slab.at[R_BFC2, 0:HIDDEN].set(params["fc2_b"])
    slab = slab.at[R_BHEAD, 0:ACTION].set(params["mean_b"])
    slab = slab.at[R_BHEAD, ACTION:2 * ACTION].set(params["logstd_b"])
    return slab


def gaussian_policy_forward(params, state, block_m=256):
    """Equivalent of Gaussian1dConvPolicy.forward(state) -> (mean, log_std)."""
    Bn, sdim = state.shape
    assert sdim == STATE_DIM
    m8 = ((Bn + 7) // 8) * 8
    bm = m8 if m8 <= block_m else block_m          # one block for small batches
    m_pad = ((m8 + bm - 1) // bm) * bm

    # zero-padded batch rows + conv1 length padding, in one (m_pad, 24) slab
    xp = jnp.zeros((m_pad, XP_PAD_W), jnp.float32)
    xp = xp.at[:Bn, PAD1:PAD1 + STATE_DIM].set(state.astype(jnp.float32))

    wslab = _prep_operands(params)

    out = pl.pallas_call(
        _policy_kernel,
        grid=(m_pad // bm,),
        in_specs=[pl.BlockSpec((bm, XP_PAD_W), lambda i: (i, 0)),
                  pl.BlockSpec((WSLAB_ROWS, N_PAD), lambda i: (0, 0))],
        out_specs=pl.BlockSpec((bm, N_PAD), lambda i: (i, 0)),
        out_shape=jax.ShapeDtypeStruct((m_pad, N_PAD), jnp.float32),
        compiler_params=pltpu.CompilerParams(
            dimension_semantics=("parallel",),
            vmem_limit_bytes=4 * 1024 * 1024),
    )(xp, wslab)

    mean = out[:Bn, :ACTION]
    log_std = out[:Bn, ACTION:2 * ACTION]
    return mean, log_std


# --------------------------- pure-JAX reference --------------------------------
def im2col_1d(x_ncw, K, stride, pad):
    Bn, Cin, L = x_ncw.shape
    xpad = jnp.pad(x_ncw, ((0, 0), (0, 0), (pad, pad)))
    L_out = (L + 2 * pad - K) // stride + 1
    idx = jnp.arange(L_out)[:, None] * stride + jnp.arange(K)[None, :]
    cols = xpad[:, :, idx]                           # (B, Cin, L_out, K)
    cols = jnp.transpose(cols, (0, 2, 1, 3))         # (B, L_out, Cin, K)
    return cols.reshape(Bn * L_out, Cin * K), L_out


def reference_forward(params, state):
    Bn, _ = state.shape
    x = state[:, None, :]
    cols1, l1 = im2col_1d(x, K1, STRIDE, PAD1)
    y1 = jnp.maximum(cols1 @ params["conv1_w"].reshape(C1, K1).T + params["conv1_b"], 0.0)
    y1 = jnp.transpose(y1.reshape(Bn, l1, C1), (0, 2, 1))
    cols2, l2 = im2col_1d(y1, K2, STRIDE, PAD2)
    y2 = jnp.maximum(cols2 @ params["conv2_w"].reshape(C2, C1 * K2).T + params["conv2_b"], 0.0)
    y2 = jnp.transpose(y2.reshape(Bn, l2, C2), (0, 2, 1))
    feats = y2.reshape(Bn, C2 * l2)
    h = jnp.maximum(feats @ params["fc1_w"] + params["fc1_b"], 0.0)
    h = jnp.maximum(h @ params["fc2_w"] + params["fc2_b"], 0.0)
    mean = h @ params["mean_w"] + params["mean_b"]
    log_std = jnp.clip(h @ params["logstd_w"] + params["logstd_b"], LOG_STD_MIN, LOG_STD_MAX)
    return mean, log_std


# ------------------------------ param init -------------------------------------
def init_params(key):
    ks = jax.random.split(key, 12)

    def u(k, shape, fan_in):
        bound = 1.0 / np.sqrt(fan_in)
        return jax.random.uniform(k, shape, jnp.float32, -bound, bound)

    # Linear weights stored as (in, out) = PyTorch weight.T
    return {
        "conv1_w": u(ks[0], (C1, 1, K1), 1 * K1),
        "conv1_b": u(ks[1], (C1,), 1 * K1),
        "conv2_w": u(ks[2], (C2, C1, K2), C1 * K2),
        "conv2_b": u(ks[3], (C2,), C1 * K2),
        "fc1_w": u(ks[4], (FEAT_DIM, HIDDEN), FEAT_DIM),
        "fc1_b": u(ks[5], (HIDDEN,), FEAT_DIM),
        "fc2_w": u(ks[6], (HIDDEN, HIDDEN), HIDDEN),
        "fc2_b": u(ks[7], (HIDDEN,), HIDDEN),
        "mean_w": u(ks[8], (HIDDEN, ACTION), HIDDEN),
        "mean_b": u(ks[9], (ACTION,), HIDDEN),
        "logstd_w": u(ks[10], (HIDDEN, ACTION), HIDDEN),
        "logstd_b": u(ks[11], (ACTION,), HIDDEN),
    }


# --------------------------------- main -----------------------------------------
if __name__ == "__main__":
    key = jax.random.PRNGKey(0)
    pkey, skey = jax.random.split(key)
    params = init_params(pkey)
    state = jax.random.normal(skey, (B, STATE_DIM), jnp.float32)

    mean, log_std = jax.jit(gaussian_policy_forward)(params, state)
    jax.block_until_ready((mean, log_std))

    ref_mean, ref_log_std = reference_forward(params, state)
    np.testing.assert_allclose(np.asarray(mean), np.asarray(ref_mean), rtol=1e-5, atol=1e-5)
    np.testing.assert_allclose(np.asarray(log_std), np.asarray(ref_log_std), rtol=1e-5, atol=1e-5)
    assert mean.shape == (B, ACTION) and log_std.shape == (B, ACTION)
    assert float(jnp.max(log_std)) <= LOG_STD_MAX and float(jnp.min(log_std)) >= LOG_STD_MIN

    print("KERNEL_OK")
</pallas_src>

<mosaic_0001>
module attributes {stable_mosaic.version = 11 : i64} {
  func.func @_policy_kernel(%arg0: i32, %arg1: memref<8x24xf32, #tpu.memory_space<vmem>>, %arg2: memref<224x128xf32, #tpu.memory_space<vmem>>, %arg3: memref<8x128xf32, #tpu.memory_space<vmem>>) attributes {dimension_semantics = [#tpu.dimension_semantics<parallel>], iteration_bounds = array<i64: 1>, scalar_prefetch = 0 : i64, scratch_operands = 0 : i64, tpu.core_type = #tpu.core_type<tc>, window_params = [{transform_indices = @transform_0, window_bounds = array<i64: 8, 24>}, {pipeline_mode = #tpu.pipeline_mode<synchronous>, transform_indices = @transform_1, window_bounds = array<i64: 224, 128>}, {transform_indices = @transform_2, window_bounds = array<i64: 8, 128>}]} {
    %c0 = arith.constant 0 : index
    %c0_0 = arith.constant 0 : index
    %0 = vector.load %arg1[%c0, %c0_0] : memref<8x24xf32, #tpu.memory_space<vmem>>, vector<8x24xf32>
    %c0_1 = arith.constant 0 : index
    %c0_2 = arith.constant 0 : index
    %1 = vector.load %arg2[%c0_1, %c0_2] : memref<224x128xf32, #tpu.memory_space<vmem>>, vector<24x64xf32>
    %cst = arith.constant dense<0.000000e+00> : vector<8x64xf32>
    %2 = tpu.matmul %0, %1, %cst {dimension_numbers = #tpu.dot_dimension_numbers<[1], [0], [0], [1], [0, 0, 1, 1], [], []>} : vector<8x24xf32>, vector<24x64xf32>, vector<8x64xf32> -> vector<8x64xf32>
    %c216 = arith.constant 216 : index
    %c0_3 = arith.constant 0 : index
    %3 = vector.load %arg2[%c216, %c0_3] : memref<224x128xf32, #tpu.memory_space<vmem>>, vector<1x64xf32>
    %4 = vector.broadcast %3 : vector<1x64xf32> to vector<8x64xf32>
    %5 = arith.addf %2, %4 : vector<8x64xf32>
    %cst_4 = arith.constant 0.000000e+00 : f32
    %6 = vector.broadcast %cst_4 : f32 to vector<8x64xf32>
    %7 = arith.maximumf %5, %6 : vector<8x64xf32>
    %c24 = arith.constant 24 : index
    %c0_5 = arith.constant 0 : index
    %8 = vector.load %arg2[%c24, %c0_5] : memref<224x128xf32, #tpu.memory_space<vmem>>, vector<64x64xf32>
    %cst_6 = arith.constant dense<0.000000e+00> : vector<8x64xf32>
    %9 = tpu.matmul %7, %8, %cst_6 {dimension_numbers = #tpu.dot_dimension_numbers<[1], [0], [0], [1], [0, 0, 1, 1], [], []>} : vector<8x64xf32>, vector<64x64xf32>, vector<8x64xf32> -> vector<8x64xf32>
    %c217 = arith.constant 217 : index
    %c0_7 = arith.constant 0 : index
    %10 = vector.load %arg2[%c217, %c0_7] : memref<224x128xf32, #tpu.memory_space<vmem>>, vector<1x64xf32>
    %11 = vector.broadcast %10 : vector<1x64xf32> to vector<8x64xf32>
    %12 = arith.addf %9, %11 : vector<8x64xf32>
    %cst_8 = arith.constant 0.000000e+00 : f32
    %13 = vector.broadcast %cst_8 : f32 to vector<8x64xf32>
    %14 = arith.maximumf %12, %13 : vector<8x64xf32>
    %c88 = arith.constant 88 : index
    %c0_9 = arith.constant 0 : index
    %15 = vector.load %arg2[%c88, %c0_9] : memref<224x128xf32, #tpu.memory_space<vmem>>, vector<64x32xf32>
    %cst_10 = arith.constant dense<0.000000e+00> : vector<8x32xf32>
    %16 = tpu.matmul %14, %15, %cst_10 {dimension_numbers = #tpu.dot_dimension_numbers<[1], [0], [0], [1], [0, 0, 1, 1], [], []>} : vector<8x64xf32>, vector<64x32xf32>, vector<8x32xf32> -> vector<8x32xf32>
    %c218 = arith.constant 218 : index
    %c0_11 = arith.constant 0 : index
    %17 = vector.load %arg2[%c218, %c0_11] : memref<224x128xf32, #tpu.memory_space<vmem>>, vector<1x32xf32>
    %18 = vector.broadcast %17 : vector<1x32xf32> to vector<8x32xf32>
    %19 = arith.addf %16, %18 : vector<8x32xf32>
    %cst_12 = arith.constant 0.000000e+00 : f32
    %20 = vector.broadcast %cst_12 : f32 to vector<8x32xf32>
    %21 = arith.maximumf %19, %20 : vector<8x32xf32>
    %c152 = arith.constant 152 : index
    %c0_13 = arith.constant 0 : index
    %22 = vector.load %arg2[%c152, %c0_13] : memref<224x128xf32, #tpu.memory_space<vmem>>, vector<32x32xf32>
    %cst_14 = arith.constant dense<0.000000e+00> : vector<8x32xf32>
    %23 = tpu.matmul %21, %22, %cst_14 {dimension_numbers = #tpu.dot_dimension_numbers<[1], [0], [0], [1], [0, 0, 1, 1], [], []>} : vector<8x32xf32>, vector<32x32xf32>, vector<8x32xf32> -> vector<8x32xf32>
    %c219 = arith.constant 219 : index
    %c0_15 = arith.constant 0 : index
    %24 = vector.load %arg2[%c219, %c0_15] : memref<224x128xf32, #tpu.memory_space<vmem>>, vector<1x32xf32>
    %25 = vector.broadcast %24 : vector<1x32xf32> to vector<8x32xf32>
    %26 = arith.addf %23, %25 : vector<8x32xf32>
    %cst_16 = arith.constant 0.000000e+00 : f32
    %27 = vector.broadcast %cst_16 : f32 to vector<8x32xf32>
    %28 = arith.maximumf %26, %27 : vector<8x32xf32>
    %c184 = arith.constant 184 : index
    %c0_17 = arith.constant 0 : index
    %29 = vector.load %arg2[%c184, %c0_17] : memref<224x128xf32, #tpu.memory_space<vmem>>, vector<32x128xf32>
    %cst_18 = arith.constant dense<0.000000e+00> : vector<8x128xf32>
    %30 = tpu.matmul %28, %29, %cst_18 {dimension_numbers = #tpu.dot_dimension_numbers<[1], [0], [0], [1], [0, 0, 1, 1], [], []>} : vector<8x32xf32>, vector<32x128xf32>, vector<8x128xf32> -> vector<8x128xf32>
    %c220 = arith.constant 220 : index
    %c0_19 = arith.constant 0 : index
    %31 = vector.load %arg2[%c220, %c0_19] : memref<224x128xf32, #tpu.memory_space<vmem>>, vector<1x128xf32>
    %32 = vector.broadcast %31 : vector<1x128xf32> to vector<8x128xf32>
    %33 = arith.addf %30, %32 : vector<8x128xf32>
    %34 = tpu.iota {dimensions = array<i32: 1>} : vector<8x128xi32>
    %c4_i32 = arith.constant 4 : i32
    %35 = vector.broadcast %c4_i32 : i32 to vector<8x128xi32>
    %36 = arith.cmpi sge, %34, %35 : vector<8x128xi32>
    %c8_i32 = arith.constant 8 : i32
    %37 = vector.broadcast %c8_i32 : i32 to vector<8x128xi32>
    %38 = arith.cmpi slt, %34, %37 : vector<8x128xi32>
    %39 = arith.andi %36, %38 : vector<8x128xi1>
    %cst_20 = arith.constant -2.000000e+01 : f32
    %cst_21 = arith.constant 2.000000e+00 : f32
    %40 = vector.broadcast %cst_20 : f32 to vector<8x128xf32>
    %41 = arith.maximumf %40, %33 : vector<8x128xf32>
    %42 = vector.broadcast %cst_21 : f32 to vector<8x128xf32>
    %43 = arith.minimumf %42, %41 : vector<8x128xf32>
    %44 = arith.select %39, %43, %33 : vector<8x128xi1>, vector<8x128xf32>
    %c0_22 = arith.constant 0 : index
    %c0_23 = arith.constant 0 : index
    %45 = vector.load %arg3[%c0_22, %c0_23] : memref<8x128xf32, #tpu.memory_space<vmem>>, vector<8x128xf32>
    tpu.vector_store %arg3[%c0_22, %c0_23], %44 {strides = array<i32>} : memref<8x128xf32, #tpu.memory_space<vmem>>, vector<8x128xf32>,
    return
  }
  func.func @transform_0(%arg0: i32) -> (i32, i32) {
    %c0_i32 = arith.constant 0 : i32
    %c0_i32_0 = arith.constant 0 : i32
    return %arg0, %c0_i32 : i32, i32
  }
  func.func @transform_1(%arg0: i32) -> (i32, i32) {
    %c0_i32 = arith.constant 0 : i32
    %c0_i32_0 = arith.constant 0 : i32
    %c0_i32_1 = arith.constant 0 : i32
    return %c0_i32, %c0_i32_0 : i32, i32
  }
  func.func @transform_2(%arg0: i32) -> (i32, i32) {
    %c0_i32 = arith.constant 0 : i32
    %c0_i32_0 = arith.constant 0 : i32
    return %arg0, %c0_i32 : i32, i32
  }
}

</mosaic_0001>

<llo_original>
// kernel: tile.13
$region0: #{tile.13}
  #allocation0 [shape = 's32[1]{0}', space=sflag, size = 0x4, scoped, tag = 'scoped memory for tile.13']
  %s0 = inlined_call_operand.vmem [shape: f32[8], index: 0, kind: input, shape index: {}]
  %s1 = inlined_call_operand.vmem [shape: f32[8,8], index: 1, kind: output, shape index: {}]
  // Predicated region
  $region2: #{tile.13} parent=0 // pred_check
    _
  $region3: #{tile.13} parent=0 // pred_check_branch
    %3 = sbr.rel (0) target = $region5
  $region4: #{tile.13} parent=0 // pred_region
    _
  $region5: #{tile.13} parent=0 // pred_fallthru
    _
  %v4 = vld [vmem:[%s0] ss:$0 sm:$0xff]
  %5 = vst [vmem:[%s1] sm:$0xff] %v4

// kernel: tile.18
$region0: #{tile.18}
  #allocation0 [shape = 's32[1]{0}', space=sflag, size = 0x4, scoped, tag = 'scoped memory for tile.18']
  %s0 = inlined_call_operand.vmem [shape: f32[16], index: 0, kind: input, shape index: {}]
  %s1 = inlined_call_operand.vmem [shape: f32[4,16], index: 1, kind: output, shape index: {}]
  // Predicated region
  $region2: #{tile.18} parent=0 // pred_check
    _
  $region3: #{tile.18} parent=0 // pred_check_branch
    %3 = sbr.rel (0) target = $region5
  $region4: #{tile.18} parent=0 // pred_region
    _
  $region5: #{tile.18} parent=0 // pred_fallthru
    _
  %v4 = vld [vmem:[%s0] ss:$0 sm:$0xff]
  %5 = vst [vmem:[%s1] sm:$0xf] %v4

// kernel: gaussian_policy_forward.1
$region0: #{gaussian_policy_forward.1}
  #allocation0 [shape = 'u32[]', space=smem, size = 0x4, offset = 0x4, fixed_abs, tag = 'smem constant byte address 0x4 - core index']
  #allocation1 [shape = 'u32[72,128]{1,0:T(1,128)}', space=vmem, size = 0x9000, scoped, tag = 'internal scratch']
  %s0 = inlined_call_operand.vmem [shape: f32[8,24], index: 0, kind: input, shape index: {}]
  %s1 = inlined_call_operand.vmem [shape: f32[224,128], index: 1, kind: input, shape index: {}]
  %s2 = inlined_call_operand.vmem [shape: f32[8,128], index: 2, kind: output, shape index: {}]
  %s3 = sld [smem:[#allocation0]]
  $region18: #{gaussian_policy_forward.1} parent=0
    _
  %s5 = ssub.s32 1, %s3
  %s6 = scalar_select 0, %s5, %s3
  // Predicated region
  $region2: #{gaussian_policy_forward.1} parent=0 // pred_check
    _
  $region3: #{gaussian_policy_forward.1} parent=0 // pred_check_branch
    %8 = sbr.rel (0) target = $region5
  $region4: #{gaussian_policy_forward.1} parent=0 // pred_region
    _
  $region5: #{gaussian_policy_forward.1} parent=0 // pred_fallthru
    _
  // Predicated region
  $region6: #{gaussian_policy_forward.1} parent=0 // pred_check
    _
  $region7: #{gaussian_policy_forward.1} parent=0 // pred_check_branch
    %10 = sbr.rel (0) target = $region9
  $region8: #{gaussian_policy_forward.1} parent=0 // pred_region
    _
  $region9: #{gaussian_policy_forward.1} parent=0 // pred_fallthru
    _
  %v11 = vld [vmem:[%s0] sm:$0xff]
  %v12 = vld [vmem:[%s1] sm:$0xff]
  %v13 = vld [vmem:[%s1 + $0x8] sm:$0xff]
  %v14 = vld [vmem:[%s1 + $0x10] sm:$0xff]
  %v15 = vld [vmem:[%s1 + $0xd8] sm:$0x1]
  %v16 = vperm.slane %v15, 0
  %vm17 = vcmask 195584
  %v19 = vsel %vm17, %v11, 0
  %21 = vmatpush.msra.mxu0 0.0
  %22 = vmatpush.msra.mxu0 0.0
  %23 = vmatpush.msra.mxu0 0.0
  %24 = vmatpush.msra.mxu0 0.0
  %25 = vmatpush.msra.mxu0 0.0
  %26 = vmatpush.msra.mxu0 0.0
  %27 = vmatpush.msra.mxu0 0.0
  %28 = vmatpush.msra.mxu0 0.0
  %29 = vmatpush.msra.mxu0 0.0
  %30 = vmatpush.msra.mxu0 0.0
  %31 = vmatpush.msra.mxu0 0.0
  %32 = vmatpush.msra.mxu0 0.0
  %33 = vmatpush.msra.mxu0 0.0
  %34 = vmatpush.msra.mxu0 %v14
  %35 = vmatpush.msra.mxu0 %v13
  %36 = vmatpush.msra.mxu0 %v12
  %37 = vmatmul.f32.gmra.mxu0 %v19
  %v38 = vpop.f32.mrf.mxu0
  %v39 = vadd.f32 %v16, %v38
  %40 = vdwg.mxu0
  %v41 = vmax.f32 %v39, 0.0
  %v42 = vld [vmem:[%s1 + $0x18] sm:$0xff]
  %v43 = vld [vmem:[%s1 + $0x20] sm:$0xff]
  %v44 = vld [vmem:[%s1 + $0x28] sm:$0xff]
  %v45 = vld [vmem:[%s1 + $0x30] sm:$0xff]
  %v46 = vld [vmem:[%s1 + $0x38] sm:$0xff]
  %v47 = vld [vmem:[%s1 + $0x40] sm:$0xff]
  %v48 = vld [vmem:[%s1 + $0x48] sm:$0xff]
  %v49 = vld [vmem:[%s1 + $0x50] sm:$0xff]
  %v50 = vld [vmem:[%s1 + $0xd9] sm:$0x1]
  %v51 = vperm.slane %v50, 0
  %vm52 = vcmask 523264
  %v54 = vsel %vm52, %v41, 0
  %56 = vmatpush.msra.mxu0 0.0
  %57 = vmatpush.msra.mxu0 0.0
  %58 = vmatpush.msra.mxu0 0.0
  %59 = vmatpush.msra.mxu0 0.0
  %60 = vmatpush.msra.mxu0 0.0
  %61 = vmatpush.msra.mxu0 0.0
  %62 = vmatpush.msra.mxu0 0.0
  %63 = vmatpush.msra.mxu0 0.0
  %64 = vmatpush.msra.mxu0 %v49
  %65 = vmatpush.msra.mxu0 %v48
  %66 = vmatpush.msra.mxu0 %v47
  %67 = vmatpush.msra.mxu0 %v46
  %68 = vmatpush.msra.mxu0 %v45
  %69 = vmatpush.msra.mxu0 %v44
  %70 = vmatpush.msra.mxu0 %v43
  %71 = vmatpush.msra.mxu0 %v42
  %72 = vmatmul.f32.gmra.mxu0 %v54
  %v73 = vpop.f32.mrf.mxu0
  %v74 = vadd.f32 %v51, %v73
  %75 = vdwg.mxu0
  %v76 = vmax.f32 %v74, 0.0
  %v77 = vld [vmem:[%s1 + $0x58] sm:$0xff]
  %v78 = vld [vmem:[%s1 + $0x60] sm:$0xff]
  %v79 = vld [vmem:[%s1 + $0x68] sm:$0xff]
  %v80 = vld [vmem:[%s1 + $0x70] sm:$0xff]
  %v81 = vld [vmem:[%s1 + $0x78] sm:$0xff]
  %v82 = vld [vmem:[%s1 + $0x80] sm:$0xff]
  %v83 = vld [vmem:[%s1 + $0x88] sm:$0xff]
  %v84 = vld [vmem:[%s1 + $0x90] sm:$0xff]
  %v85 = vld [vmem:[%s1 + $0xda] sm:$0x1]
  %v86 = vperm.slane %v85, 0
  %v88 = vsel %vm52, %v76, 0
  %90 = vmatpush.msra.mxu0 0.0
  %91 = vmatpush.msra.mxu0 0.0
  %92 = vmatpush.msra.mxu0 0.0
  %93 = vmatpush.msra.mxu0 0.0
  %94 = vmatpush.msra.mxu0 0.0
  %95 = vmatpush.msra.mxu0 0.0
  %96 = vmatpush.msra.mxu0 0.0
  %97 = vmatpush.msra.mxu0 0.0
  %98 = vmatpush.msra.mxu0 %v84
  %99 = vmatpush.msra.mxu0 %v83
  %100 = vmatpush.msra.mxu0 %v82
  %101 = vmatpush.msra.mxu0 %v81
  %102 = vmatpush.msra.mxu0 %v80
  %103 = vmatpush.msra.mxu0 %v79
  %104 = vmatpush.msra.mxu0 %v78
  %105 = vmatpush.msra.mxu0 %v77
  %106 = vmatmul.f32.gmra.mxu0 %v88
  %v107 = vpop.f32.mrf.mxu0
  %v108 = vadd.f32 %v86, %v107
  %109 = vdwg.mxu0
  %v110 = vmax.f32 %v108, 0.0
  %v111 = vld [vmem:[%s1 + $0x98] sm:$0xff]
  %v112 = vld [vmem:[%s1 + $0xa0] sm:$0xff]
  %v113 = vld [vmem:[%s1 + $0xa8] sm:$0xff]
  %v114 = vld [vmem:[%s1 + $0xb0] sm:$0xff]
  %v115 = vld [vmem:[%s1 + $0xdb] sm:$0x1]
  %v116 = vperm.slane %v115, 0
  %vm117 = vcmask 261120
  %v119 = vsel %vm117, %v110, 0
  %121 = vmatpush.msra.mxu0 0.0
  %122 = vmatpush.msra.mxu0 0.0
  %123 = vmatpush.msra.mxu0 0.0
  %124 = vmatpush.msra.mxu0 0.0
  %125 = vmatpush.msra.mxu0 0.0
  %126 = vmatpush.msra.mxu0 0.0
  %127 = vmatpush.msra.mxu0 0.0
  %128 = vmatpush.msra.mxu0 0.0
  %129 = vmatpush.msra.mxu0 0.0
  %130 = vmatpush.msra.mxu0 0.0
  %131 = vmatpush.msra.mxu0 0.0
  %132 = vmatpush.msra.mxu0 0.0
  %133 = vmatpush.msra.mxu0 %v114
  %134 = vmatpush.msra.mxu0 %v113
  %135 = vmatpush.msra.mxu0 %v112
  %136 = vmatpush.msra.mxu0 %v111
  %137 = vmatmul.f32.gmra.mxu0 %v119
  %v138 = vpop.f32.mrf.mxu0
  %v139 = vadd.f32 %v116, %v138
  %140 = vdwg.mxu0
  %v141 = vmax.f32 %v139, 0.0
  %v142 = vld [vmem:[%s1 + $0xb8] sm:$0xff]
  %v143 = vld [vmem:[%s1 + $0xc0] sm:$0xff]
  %v144 = vld [vmem:[%s1 + $0xc8] sm:$0xff]
  %v145 = vld [vmem:[%s1 + $0xd0] sm:$0xff]
  %v146 = vld [vmem:[%s1 + $0xdc] sm:$0x1]
  %v147 = vperm.slane %v146, 0
  %v149 = vsel %vm117, %v141, 0
  %151 = vmatpush.msra.mxu0 0.0
  %152 = vmatpush.msra.mxu0 0.0
  %153 = vmatpush.msra.mxu0 0.0
  %154 = vmatpush.msra.mxu0 0.0
  %155 = vmatpush.msra.mxu0 0.0
  %156 = vmatpush.msra.mxu0 0.0
  %157 = vmatpush.msra.mxu0 0.0
  %158 = vmatpush.msra.mxu0 0.0
  %159 = vmatpush.msra.mxu0 0.0
  %160 = vmatpush.msra.mxu0 0.0
  %161 = vmatpush.msra.mxu0 0.0
  %162 = vmatpush.msra.mxu0 0.0
  %163 = vmatpush.msra.mxu0 %v145
  %164 = vmatpush.msra.mxu0 %v144
  %165 = vmatpush.msra.mxu0 %v143
  %166 = vmatpush.msra.mxu0 %v142
  %167 = vmatmul.f32.gmra.mxu0 %v149
  %v168 = vpop.f32.mrf.mxu0
  %v169 = vadd.f32 %v147, %v168
  %170 = vdwg.mxu0
  %v171 = vlaneseq
  %v172 = vand.u32 %v171, 127
  %vm173 = vcmp.ge.s32.totalorder %v172, 4
  %vm174 = vcmp.lt.s32.totalorder %v172, 8
  %vm175 = vmand %vm173, %vm174
  %v176 = vmax.f32 %v169, -20.0
  %v177 = vmin.f32 %v176, 2.0
  %v178 = vsel %vm175, %v177, %v169
  %179 = vst [vmem:[%s2] sm:$0xff] %v178
  // Predicated region
  $region10: #{gaussian_policy_forward.1} parent=0 // pred_check
    _
  $region11: #{gaussian_policy_forward.1} parent=0 // pred_check_branch
    %181 = sbr.rel (0) target = $region13
  $region12: #{gaussian_policy_forward.1} parent=0 // pred_region
    _
  $region13: #{gaussian_policy_forward.1} parent=0 // pred_fallthru
    _
  // Predicated region
  $region14: #{gaussian_policy_forward.1} parent=0 // pred_check
    _
  $region15: #{gaussian_policy_forward.1} parent=0 // pred_check_branch
    %183 = sbr.rel (0) target = $region17
  $region16: #{gaussian_policy_forward.1} parent=0 // pred_region
    _
  $region17: #{gaussian_policy_forward.1} parent=0 // pred_fallthru
    _

</llo_original>
